<compile_context>
chip_gen: v7x
topology: tpu7x:2x2x1
jax: 0.10.0
libtpu: 0.0.40
codegen_flags: <defaults>
</compile_context>

<pallas_src>
import functools
import math

import numpy as np
import jax
import jax.numpy as jnp
from jax.experimental import pallas as pl
from jax.experimental.pallas import tpu as pltpu


def _phase_encode_kernel(x_ref, expand_ref, mask_ref, o_ref, *, qmax, scale):
    # x_ref      : (TM, CT)         f32   input tile (CT channels)
    # expand_ref : (CT, CT*n_bits)  bf16/f32, 0/1 diagonal block of the expansion
    # mask_ref   : (1, CT*n_bits)   i32   tiled bit mask (MSB first per element)
    # o_ref      : (TM, CT*n_bits)  out_dtype
    x = x_ref[...]
    # Quantize; astype(int32) truncates toward zero, matching torch .int().
    # (Padded rows of a ragged last block may hold garbage; their output rows are
    #  masked on store, so the undefined quantized value is never observable.)
    xq = (x * qmax).astype(jnp.int32).astype(expand_ref.dtype)           # (TM, CT)
    # Lane-dense expansion on the (otherwise idle) MXU: output column
    # k*n_bits + b picks input column k.  Exact: integer values <= 2**n_bits - 1
    # times a 0/1 matrix with a single 1 per column, accumulated in f32.
    xrep = jnp.dot(xq, expand_ref[...],
                   preferred_element_type=jnp.float32)                   # (TM, CT*nb)
    masked = jnp.bitwise_and(xrep.astype(jnp.int32), mask_ref[...])      # (TM, CT*nb)
    o_ref[...] = (masked.astype(jnp.float32) * scale).astype(o_ref.dtype)


def _round_up(x, m):
    return ((x + m - 1) // m) * m


def _pick_col_tile(c, n_bits, max_cn_tile=2048):
    """Channel tile for the encoded-column grid axis.

    Keeps the expansion block bounded (c_tile * c_tile*n_bits) and the matmul N
    dimension MXU-aligned.  c_tile is a multiple of 128 (so the input block stays
    lane-dense) or the full channel extent."""
    cn = c * n_bits
    if cn <= max_cn_tile or cn % 128 != 0:
        # TODO(synk): pad the encoded-column dim to a multiple of 128 when ragged
        # (avoids vst.msk partial stores); at small C this is moot.
        return c
    best = c
    for ct in range(128, c, 128):
        if c % ct == 0 and ct * n_bits <= max_cn_tile:
            best = ct
    return best


def _pick_row_tile(rows, c_tile, cn_tile, out_bytes, row_tile=None):
    """Byte-based row tile: big enough to amortize the ~0.35 us per-step overhead,
    small enough that the double-buffered in/out tiles plus the f32 dot-result /
    int32 intermediates fit a ~32 MiB working set, while keeping >= ~8 grid blocks
    (>= 4 per v7x TensorCore) when rows permit."""
    if rows <= 8:
        return rows                                   # block == full row extent
    if row_tile is None:
        per_row = (2 * c_tile * 4                     # input tile, double-buffered f32
                   + 2 * cn_tile * out_bytes          # output tile, double-buffered
                   + 3 * cn_tile * 4)                 # f32 dot result + i32/f32 temps
        budget = 32 * 1024 * 1024
        tm_vmem = max(8, budget // per_row)
        # Target >= 8 grid blocks when rows permit, floor of ~512 rows per block.
        tm_pipe = max(512, _round_up(pl.cdiv(rows, 8), 8))
        row_tile = min(tm_vmem, tm_pipe)
    tm = min(row_tile, _round_up(rows, 8))
    tm = max(8, (tm // 8) * 8)
    return tm


def phase_time_series_encoding(x, n_bits: int = 8, initial_scale: float = None,
                               row_tile: int = None, out_dtype=None):
    """Pallas TPU implementation of PhaseTimeSeriesEncoding.forward."""
    assert 1 <= n_bits <= 24, "f32 MXU expansion is exact only for n_bits <= 24"
    if initial_scale is None:
        initial_scale = 1.0 / (2 ** (n_bits - 1))
    initial_scale = float(initial_scale)

    if out_dtype is None:
        # Encoded values are {0, 2^k * scale}.  When the scale is a power of two
        # (the default) every value is exactly representable in bf16, so a bf16
        # output halves the dominant HBM write traffic at zero numeric cost.
        mant, _ = math.frexp(initial_scale)
        out_dtype = jnp.bfloat16 if mant == 0.5 else jnp.float32
    out_dtype = jnp.dtype(out_dtype)

    orig_shape = x.shape
    c = orig_shape[-1]
    rows = int(np.prod(orig_shape[:-1])) if len(orig_shape) > 1 else 1
    cn = c * n_bits
    x2 = jnp.asarray(x, jnp.float32).reshape(rows, c)

    # Column tiling: the full expansion matrix is block-diagonal with identical
    # (c_tile, c_tile*n_bits) diagonal blocks, so only one block is ever needed.
    c_tile = _pick_col_tile(c, n_bits)
    cn_tile = c_tile * n_bits
    n_col_blocks = c // c_tile

    # bf16 MXU operands are exact for integer values <= 2^8 (n_bits <= 8);
    # otherwise keep f32 operands (exact up to n_bits <= 24).
    op_dtype = jnp.bfloat16 if n_bits <= 8 else jnp.float32

    # Hoisted trace-time constants, passed as real kernel inputs (never captured).
    bits = (1 << np.arange(n_bits)[::-1]).astype(np.int32)        # [2^(nb-1) .. 1]
    mask = jnp.asarray(np.tile(bits, c_tile)[None, :])            # (1, cn_tile) i32
    cols = np.arange(cn_tile)
    expand_np = np.zeros((c_tile, cn_tile), np.float32)
    expand_np[cols // n_bits, cols] = 1.0                         # 0/1 diagonal block
    expand = jnp.asarray(expand_np, op_dtype)

    tm = _pick_row_tile(rows, c_tile, cn_tile, out_dtype.itemsize, row_tile)
    grid = (pl.cdiv(rows, tm), n_col_blocks)   # ragged last row block is masked

    # Explicit scoped-VMEM limit: double-buffered in/out tiles + resident
    # expansion/mask + in-kernel f32/i32 intermediates, with ~1.5x headroom.
    est = (2 * tm * c_tile * 4
           + 2 * tm * cn_tile * out_dtype.itemsize
           + 3 * tm * cn_tile * 4
           + 2 * c_tile * cn_tile * expand.dtype.itemsize
           + 2 * cn_tile * 4)
    vmem_limit = int(min(48 * 1024 * 1024, max(32 * 1024 * 1024, est + est // 2)))

    kernel = functools.partial(_phase_encode_kernel,
                               qmax=float(2 ** n_bits - 1),
                               scale=initial_scale)

    # TODO(synk): single-buffer the two constant inputs (pipeline_mode=pl.Buffered(1))
    # once that pipeline mode is plumbed through the classic pallas_call TPU pipeline;
    # their block index never changes, so the second revolving buffer is pure waste.
    out = pl.pallas_call(
        kernel,
        grid=grid,
        in_specs=[
            pl.BlockSpec((tm, c_tile), lambda i, j: (i, j)),
            pl.BlockSpec((c_tile, cn_tile), lambda i, j: (0, 0)),   # resident constant
            pl.BlockSpec((1, cn_tile), lambda i, j: (0, 0)),        # resident constant
        ],
        out_specs=pl.BlockSpec((tm, cn_tile), lambda i, j: (i, j)),
        out_shape=jax.ShapeDtypeStruct((rows, cn), out_dtype),
        compiler_params=pltpu.CompilerParams(
            dimension_semantics=("parallel", "parallel"),
            vmem_limit_bytes=vmem_limit),
    )(x2, expand, mask)

    return out.reshape(*orig_shape[:-1], cn)


def _reference(x, n_bits=8, initial_scale=None):
    """Pure-JAX reference mirroring the PyTorch forward (f32)."""
    if initial_scale is None:
        initial_scale = 1.0 / (2 ** (n_bits - 1))
    bits = jnp.asarray((1 << np.arange(n_bits)[::-1]).astype(np.int32))
    xi = (x * (2 ** n_bits - 1)).astype(jnp.int32)
    enc = jnp.bitwise_and(xi[..., None], bits).astype(jnp.float32) * initial_scale
    return enc.reshape(*x.shape[:-1], -1)


if __name__ == "__main__":
    key = jax.random.PRNGKey(0)
    # small shape consistent with a time-series input (batch, channels, T, features)
    x = jax.random.uniform(key, (2, 4, 16, 16), dtype=jnp.float32)  # values in [0, 1]

    ref = _reference(x, n_bits=8)

    # Default (bf16 output — exact for the default power-of-two scale).
    out = phase_time_series_encoding(x, n_bits=8)
    out = jax.block_until_ready(out)
    assert out.shape == (2, 4, 16, 16 * 8), out.shape
    assert out.dtype == jnp.bfloat16, out.dtype
    np.testing.assert_allclose(np.asarray(out).astype(np.float32),
                               np.asarray(ref), rtol=0, atol=0)

    # Explicit f32 output path.
    out_f32 = phase_time_series_encoding(x, n_bits=8, out_dtype=jnp.float32)
    out_f32 = jax.block_until_ready(out_f32)
    np.testing.assert_allclose(np.asarray(out_f32), np.asarray(ref), rtol=0, atol=0)

    print("KERNEL_OK")
</pallas_src>

<mosaic_0001>
module attributes {stable_mosaic.version = 11 : i64} {
  func.func @_phase_encode_kernel(%arg0: i32, %arg1: i32, %arg2: memref<128x16xf32, #tpu.memory_space<vmem>>, %arg3: memref<16x128xbf16, #tpu.memory_space<vmem>>, %arg4: memref<1x128xi32, #tpu.memory_space<vmem>>, %arg5: memref<128x128xbf16, #tpu.memory_space<vmem>>) attributes {dimension_semantics = [#tpu.dimension_semantics<parallel>, #tpu.dimension_semantics<parallel>], iteration_bounds = array<i64: 1, 1>, scalar_prefetch = 0 : i64, scratch_operands = 0 : i64, tpu.core_type = #tpu.core_type<tc>, window_params = [{transform_indices = @transform_0, window_bounds = array<i64: 128, 16>}, {pipeline_mode = #tpu.pipeline_mode<synchronous>, transform_indices = @transform_1, window_bounds = array<i64: 16, 128>}, {pipeline_mode = #tpu.pipeline_mode<synchronous>, transform_indices = @transform_2, window_bounds = array<i64: 1, 128>}, {transform_indices = @transform_3, window_bounds = array<i64: 128, 128>}]} {
    %c0 = arith.constant 0 : index
    %c0_0 = arith.constant 0 : index
    %0 = vector.load %arg2[%c0, %c0_0] : memref<128x16xf32, #tpu.memory_space<vmem>>, vector<128x16xf32>
    %cst = arith.constant 2.550000e+02 : f32
    %1 = vector.broadcast %cst : f32 to vector<128x16xf32>
    %2 = arith.mulf %0, %1 : vector<128x16xf32>
    %3 = arith.fptosi %2 : vector<128x16xf32> to vector<128x16xi32>
    %4 = arith.sitofp %3 : vector<128x16xi32> to vector<128x16xbf16>
    %c0_1 = arith.constant 0 : index
    %c0_2 = arith.constant 0 : index
    %5 = vector.load %arg3[%c0_1, %c0_2] : memref<16x128xbf16, #tpu.memory_space<vmem>>, vector<16x128xbf16>
    %cst_3 = arith.constant dense<0.000000e+00> : vector<128x128xf32>
    %6 = tpu.matmul %4, %5, %cst_3 {dimension_numbers = #tpu.dot_dimension_numbers<[1], [0], [0], [1], [0, 0, 1, 1], [], []>} : vector<128x16xbf16>, vector<16x128xbf16>, vector<128x128xf32> -> vector<128x128xf32>
    %7 = arith.fptosi %6 : vector<128x128xf32> to vector<128x128xi32>
    %c0_4 = arith.constant 0 : index
    %c0_5 = arith.constant 0 : index
    %8 = vector.load %arg4[%c0_4, %c0_5] : memref<1x128xi32, #tpu.memory_space<vmem>>, vector<1x128xi32>
    %9 = vector.broadcast %8 : vector<1x128xi32> to vector<128x128xi32>
    %10 = arith.andi %7, %9 : vector<128x128xi32>
    %11 = arith.sitofp %10 : vector<128x128xi32> to vector<128x128xf32>
    %cst_6 = arith.constant 7.812500e-03 : f32
    %12 = vector.broadcast %cst_6 : f32 to vector<128x128xf32>
    %13 = arith.mulf %11, %12 : vector<128x128xf32>
    %14 = arith.truncf %13 : vector<128x128xf32> to vector<128x128xbf16>
    %c0_7 = arith.constant 0 : index
    %c0_8 = arith.constant 0 : index
    %15 = vector.load %arg5[%c0_7, %c0_8] : memref<128x128xbf16, #tpu.memory_space<vmem>>, vector<128x128xbf16>
    tpu.vector_store %arg5[%c0_7, %c0_8], %14 {strides = array<i32>} : memref<128x128xbf16, #tpu.memory_space<vmem>>, vector<128x128xbf16>,
    return
  }
  func.func @transform_0(%arg0: i32, %arg1: i32) -> (i32, i32) {
    %c0_i32 = arith.constant 0 : i32
    return %arg0, %arg1 : i32, i32
  }
  func.func @transform_1(%arg0: i32, %arg1: i32) -> (i32, i32) {
    %c0_i32 = arith.constant 0 : i32
    %c0_i32_0 = arith.constant 0 : i32
    %c0_i32_1 = arith.constant 0 : i32
    return %c0_i32, %c0_i32_0 : i32, i32
  }
  func.func @transform_2(%arg0: i32, %arg1: i32) -> (i32, i32) {
    %c0_i32 = arith.constant 0 : i32
    %c0_i32_0 = arith.constant 0 : i32
    %c0_i32_1 = arith.constant 0 : i32
    return %c0_i32, %c0_i32_0 : i32, i32
  }
  func.func @transform_3(%arg0: i32, %arg1: i32) -> (i32, i32) {
    %c0_i32 = arith.constant 0 : i32
    return %arg0, %arg1 : i32, i32
  }
}

</mosaic_0001>

<llo_original>
// kernel: tpu_custom_call.1
$region0: #{tpu_custom_call.1}
  #allocation0 [shape = 'u32[]', space=smem, size = 0x4, offset = 0x4, fixed_abs, tag = 'smem constant byte address 0x4 - core index']
  #allocation1 [shape = 'u32[144,128]{1,0:T(1,128)}', space=vmem, size = 0x12000, scoped, tag = 'internal scratch']
  %s0 = inlined_call_operand.vmem [shape: f32[128,16], index: 0, kind: input, shape index: {}]
  %s1 = inlined_call_operand.vmem [shape: bf16[16,128], index: 1, kind: input, shape index: {}]
  %s2 = inlined_call_operand.vmem [shape: s32[1,128], index: 2, kind: input, shape index: {}]
  %s3 = inlined_call_operand.hbm [shape: bf16[128,128], index: 3, kind: output, shape index: {}]
  %s4 = sld [smem:[#allocation0]]
  $region22: #{tpu_custom_call.1} parent=0
    _
  %s6 = ssub.s32 1, %s4
  %s7 = scalar_select 0, %s6, %s4
  $region1: #{tpu_custom_call.1} parent=0
    #allocation2 [shape = 'u8[32768]{0}', space=vmem, size = 0x8000, scoped, tag = 'output window, operand 0, single buffered']
    #allocation3 [shape = 's32[1]{0}', space=sflag, size = 0x4, scoped, tag = 'scoped memory for tpu_custom_call.1']
    %8 = vsyncpa [#allocation3], 0
    // Predicated region
    $region2: #{tpu_custom_call.1} parent=1 // pred_check
      _
    $region3: #{tpu_custom_call.1} parent=1 // pred_check_branch
      %10 = sbr.rel (0) target = $region5
    $region4: #{tpu_custom_call.1} parent=1 // pred_region
      _
    $region5: #{tpu_custom_call.1} parent=1 // pred_fallthru
      _
    // Predicated region
    $region6: #{tpu_custom_call.1} parent=1 // pred_check
      _
    $region7: #{tpu_custom_call.1} parent=1 // pred_check_branch
      %12 = sbr.rel (0) target = $region9
    $region8: #{tpu_custom_call.1} parent=1 // pred_region
      _
    $region9: #{tpu_custom_call.1} parent=1 // pred_fallthru
      _
    // Predicated region
    $region10: #{tpu_custom_call.1} parent=1 // pred_check
      _
    $region11: #{tpu_custom_call.1} parent=1 // pred_check_branch
      %14 = sbr.rel (0) target = $region13
    $region12: #{tpu_custom_call.1} parent=1 // pred_region
      _
    $region13: #{tpu_custom_call.1} parent=1 // pred_fallthru
      _
    %v16 = vld [vmem:[%s0] sm:$0xff]
    %v17 = vld [vmem:[%s0 + $0x8] sm:$0xff]
    %v18 = vld [vmem:[%s0 + $0x10] sm:$0xff]
    %v19 = vld [vmem:[%s0 + $0x18] sm:$0xff]
    %v20 = vld [vmem:[%s0 + $0x20] sm:$0xff]
    %v21 = vld [vmem:[%s0 + $0x28] sm:$0xff]
    %v22 = vld [vmem:[%s0 + $0x30] sm:$0xff]
    %v23 = vld [vmem:[%s0 + $0x38] sm:$0xff]
    %v24 = vld [vmem:[%s0 + $0x40] sm:$0xff]
    %v25 = vld [vmem:[%s0 + $0x48] sm:$0xff]
    %v26 = vld [vmem:[%s0 + $0x50] sm:$0xff]
    %v27 = vld [vmem:[%s0 + $0x58] sm:$0xff]
    %v28 = vld [vmem:[%s0 + $0x60] sm:$0xff]
    %v29 = vld [vmem:[%s0 + $0x68] sm:$0xff]
    %v30 = vld [vmem:[%s0 + $0x70] sm:$0xff]
    %v31 = vld [vmem:[%s0 + $0x78] sm:$0xff]
    %v32 = vmul.f32 %v16, 255.0
    %v33 = vmul.f32 %v17, 255.0
    %v34 = vmul.f32 %v18, 255.0
    %v35 = vmul.f32 %v19, 255.0
    %v36 = vmul.f32 %v20, 255.0
    %v37 = vmul.f32 %v21, 255.0
    %v38 = vmul.f32 %v22, 255.0
    %v39 = vmul.f32 %v23, 255.0
    %v40 = vmul.f32 %v24, 255.0
    %v41 = vmul.f32 %v25, 255.0
    %v42 = vmul.f32 %v26, 255.0
    %v43 = vmul.f32 %v27, 255.0
    %v44 = vmul.f32 %v28, 255.0
    %v45 = vmul.f32 %v29, 255.0
    %v46 = vmul.f32 %v30, 255.0
    %v47 = vmul.f32 %v31, 255.0
    %v48 = vcvt.f32.s32.to.zero.pseudo %v32
    %v49 = vcvt.f32.s32.to.zero.pseudo %v33
    %v50 = vcvt.f32.s32.to.zero.pseudo %v34
    %v51 = vcvt.f32.s32.to.zero.pseudo %v35
    %v52 = vcvt.f32.s32.to.zero.pseudo %v36
    %v53 = vcvt.f32.s32.to.zero.pseudo %v37
    %v54 = vcvt.f32.s32.to.zero.pseudo %v38
    %v55 = vcvt.f32.s32.to.zero.pseudo %v39
    %v56 = vcvt.f32.s32.to.zero.pseudo %v40
    %v57 = vcvt.f32.s32.to.zero.pseudo %v41
    %v58 = vcvt.f32.s32.to.zero.pseudo %v42
    %v59 = vcvt.f32.s32.to.zero.pseudo %v43
    %v60 = vcvt.f32.s32.to.zero.pseudo %v44
    %v61 = vcvt.f32.s32.to.zero.pseudo %v45
    %v62 = vcvt.f32.s32.to.zero.pseudo %v46
    %v63 = vcvt.f32.s32.to.zero.pseudo %v47
    %v64 = vcvt.s32.f32 %v48
    %v65 = vcvt.s32.f32 %v49
    %v66 = vcvt.s32.f32 %v50
    %v67 = vcvt.s32.f32 %v51
    %v68 = vcvt.s32.f32 %v52
    %v69 = vcvt.s32.f32 %v53
    %v70 = vcvt.s32.f32 %v54
    %v71 = vcvt.s32.f32 %v55
    %v72 = vcvt.s32.f32 %v56
    %v73 = vcvt.s32.f32 %v57
    %v74 = vcvt.s32.f32 %v58
    %v75 = vcvt.s32.f32 %v59
    %v76 = vcvt.s32.f32 %v60
    %v77 = vcvt.s32.f32 %v61
    %v78 = vcvt.s32.f32 %v62
    %v79 = vcvt.s32.f32 %v63
    %v80 = vpack.c.bf16 %v65, %v64
    %v81 = vpack.c.bf16 %v67, %v66
    %v82 = vpack.c.bf16 %v69, %v68
    %v83 = vpack.c.bf16 %v71, %v70
    %v84 = vpack.c.bf16 %v73, %v72
    %v85 = vpack.c.bf16 %v75, %v74
    %v86 = vpack.c.bf16 %v77, %v76
    %v87 = vpack.c.bf16 %v79, %v78
    %v88 = vld [vmem:[%s1] sm:$0xf]
    %v89 = vld [vmem:[%s1 + $0x4] sm:$0xf]
    %v92 = vunpack.c.l.b16 %v88
    %v93 = vunpack.c.l.b16 %v89
    %v94 = vpack.c.b16 %v93, %v92
    %vm96 = vcmask 130048
    %v98 = vsel %vm96, %v80, 0
    %v101 = vsel %vm96, %v81, 0
    %v104 = vsel %vm96, %v82, 0
    %v107 = vsel %vm96, %v83, 0
    %v110 = vsel %vm96, %v84, 0
    %v113 = vsel %vm96, %v85, 0
    %v116 = vsel %vm96, %v86, 0
    %v119 = vsel %vm96, %v87, 0
    %121 = vmatprep.subr.bf16.mxu0 0
    %122 = vmatpush1.bf16.msra.mxu0 %v94
    %123 = vmatprep.subr.bf16.mxu0 0
    %124 = vmatpush1.bf16.msra.mxu0 0
    %125 = vmatprep.subr.bf16.mxu0 0
    %126 = vmatpush1.bf16.msra.mxu0 0
    %127 = vmatprep.subr.bf16.mxu0 0
    %128 = vmatpush1.bf16.msra.mxu0 0
    %129 = vmatprep.subr.bf16.mxu0 0
    %130 = vmatpush1.bf16.msra.mxu0 0
    %131 = vmatprep.subr.bf16.mxu0 0
    %132 = vmatpush1.bf16.msra.mxu0 0
    %133 = vmatprep.subr.bf16.mxu0 0
    %134 = vmatpush1.bf16.msra.mxu0 0
    %135 = vmatprep.subr.bf16.mxu0 0
    %136 = vmatpush1.bf16.msra.mxu0 0
    %137 = vmatprep.subr.bf16.mxu0 0
    %138 = vmatpush1.bf16.msra.mxu0 0
    %139 = vmatprep.subr.bf16.mxu0 0
    %140 = vmatpush1.bf16.msra.mxu0 0
    %141 = vmatprep.subr.bf16.mxu0 0
    %142 = vmatpush1.bf16.msra.mxu0 0
    %143 = vmatprep.subr.bf16.mxu0 0
    %144 = vmatpush1.bf16.msra.mxu0 0
    %145 = vmatprep.subr.bf16.mxu0 0
    %146 = vmatpush1.bf16.msra.mxu0 0
    %147 = vmatprep.subr.bf16.mxu0 0
    %148 = vmatpush1.bf16.msra.mxu0 0
    %149 = vmatprep.subr.bf16.mxu0 0
    %150 = vmatpush1.bf16.msra.mxu0 0
    %151 = vmatprep.subr.bf16.mxu0 0
    %152 = vmatpush1.bf16.msra.mxu0 0
    %153 = vmatprep.mubr.bf16.mxu0 0
    %154 = vmatmul.mubr.bf16.gmra.mrb[0].mxu0 %v98
    %v155 = vpop.f32.mrb[0].mxu0
    %v156 = vadd.f32 0.0, %v155
    %v157 = vpop.f32.mrb[0].mxu0
    %v158 = vpop.f32.mrb[0].mxu0
    %v159 = vadd.f32 0.0, %v158
    %v160 = vpop.f32.mrb[0].mxu0
    %161 = vmatprep.mubr.bf16.mxu0 0
    %162 = vmatmul.mubr.bf16.gmra.mrb[0].mxu0 %v101
    %v163 = vpop.f32.mrb[0].mxu0
    %v164 = vadd.f32 0.0, %v163
    %v165 = vpop.f32.mrb[0].mxu0
    %v166 = vpop.f32.mrb[0].mxu0
    %v167 = vadd.f32 0.0, %v166
    %v168 = vpop.f32.mrb[0].mxu0
    %169 = vmatprep.mubr.bf16.mxu0 0
    %170 = vmatmul.mubr.bf16.gmra.mrb[0].mxu0 %v104
    %v171 = vpop.f32.mrb[0].mxu0
    %v172 = vadd.f32 0.0, %v171
    %v173 = vpop.f32.mrb[0].mxu0
    %v174 = vpop.f32.mrb[0].mxu0
    %v175 = vadd.f32 0.0, %v174
    %v176 = vpop.f32.mrb[0].mxu0
    %177 = vmatprep.mubr.bf16.mxu0 0
    %178 = vmatmul.mubr.bf16.gmra.mrb[0].mxu0 %v107
    %v179 = vpop.f32.mrb[0].mxu0
    %v180 = vadd.f32 0.0, %v179
    %v181 = vpop.f32.mrb[0].mxu0
    %v182 = vpop.f32.mrb[0].mxu0
    %v183 = vadd.f32 0.0, %v182
    %v184 = vpop.f32.mrb[0].mxu0
    %185 = vmatprep.mubr.bf16.mxu0 0
    %186 = vmatmul.mubr.bf16.gmra.mrb[0].mxu0 %v110
    %v187 = vpop.f32.mrb[0].mxu0
    %v188 = vadd.f32 0.0, %v187
    %v189 = vpop.f32.mrb[0].mxu0
    %v190 = vpop.f32.mrb[0].mxu0
    %v191 = vadd.f32 0.0, %v190
    %v192 = vpop.f32.mrb[0].mxu0
    %193 = vmatprep.mubr.bf16.mxu0 0
    %194 = vmatmul.mubr.bf16.gmra.mrb[0].mxu0 %v113
    %v195 = vpop.f32.mrb[0].mxu0
    %v196 = vadd.f32 0.0, %v195
    %v197 = vpop.f32.mrb[0].mxu0
    %v198 = vpop.f32.mrb[0].mxu0
    %v199 = vadd.f32 0.0, %v198
    %v200 = vpop.f32.mrb[0].mxu0
    %201 = vmatprep.mubr.bf16.mxu0 0
    %202 = vmatmul.mubr.bf16.gmra.mrb[0].mxu0 %v116
    %v203 = vpop.f32.mrb[0].mxu0
    %v204 = vadd.f32 0.0, %v203
    %v205 = vpop.f32.mrb[0].mxu0
    %v206 = vpop.f32.mrb[0].mxu0
    %v207 = vadd.f32 0.0, %v206
    %v208 = vpop.f32.mrb[0].mxu0
    %209 = vmatprep.mubr.bf16.mxu0 0
    %210 = vmatmul.mubr.bf16.gmra.mrb[0].mxu0 %v119
    %v211 = vpop.f32.mrb[0].mxu0
    %v212 = vadd.f32 0.0, %v211
    %v213 = vpop.f32.mrb[0].mxu0
    %v214 = vpop.f32.mrb[0].mxu0
    %v215 = vadd.f32 0.0, %v214
    %v216 = vpop.f32.mrb[0].mxu0
    %217 = vdwg.mxu0
    %v218 = vcvt.f32.s32.to.zero.pseudo %v156
    %v219 = vcvt.f32.s32.to.zero.pseudo %v159
    %v220 = vcvt.f32.s32.to.zero.pseudo %v164
    %v221 = vcvt.f32.s32.to.zero.pseudo %v167
    %v222 = vcvt.f32.s32.to.zero.pseudo %v172
    %v223 = vcvt.f32.s32.to.zero.pseudo %v175
    %v224 = vcvt.f32.s32.to.zero.pseudo %v180
    %v225 = vcvt.f32.s32.to.zero.pseudo %v183
    %v226 = vcvt.f32.s32.to.zero.pseudo %v188
    %v227 = vcvt.f32.s32.to.zero.pseudo %v191
    %v228 = vcvt.f32.s32.to.zero.pseudo %v196
    %v229 = vcvt.f32.s32.to.zero.pseudo %v199
    %v230 = vcvt.f32.s32.to.zero.pseudo %v204
    %v231 = vcvt.f32.s32.to.zero.pseudo %v207
    %v232 = vcvt.f32.s32.to.zero.pseudo %v212
    %v233 = vcvt.f32.s32.to.zero.pseudo %v215
    %v234 = vld [vmem:[%s2] sm:$0x1]
    %v235 = vlaneseq
    %v236 = vshrl.u32 %v235, 7
    %v237 = vsub.s32 0, %v236
    %v238 = vrot.slane %v234, %v237
    %v239 = vand.u32 %v218, %v238
    %v240 = vand.u32 %v219, %v238
    %v241 = vand.u32 %v220, %v238
    %v242 = vand.u32 %v221, %v238
    %v243 = vand.u32 %v222, %v238
    %v244 = vand.u32 %v223, %v238
    %v245 = vand.u32 %v224, %v238
    %v246 = vand.u32 %v225, %v238
    %v247 = vand.u32 %v226, %v238
    %v248 = vand.u32 %v227, %v238
    %v249 = vand.u32 %v228, %v238
    %v250 = vand.u32 %v229, %v238
    %v251 = vand.u32 %v230, %v238
    %v252 = vand.u32 %v231, %v238
    %v253 = vand.u32 %v232, %v238
    %v254 = vand.u32 %v233, %v238
    %v255 = vcvt.s32.f32 %v239
    %v256 = vcvt.s32.f32 %v240
    %v257 = vcvt.s32.f32 %v241
    %v258 = vcvt.s32.f32 %v242
    %v259 = vcvt.s32.f32 %v243
    %v260 = vcvt.s32.f32 %v244
    %v261 = vcvt.s32.f32 %v245
    %v262 = vcvt.s32.f32 %v246
    %v263 = vcvt.s32.f32 %v247
    %v264 = vcvt.s32.f32 %v248
    %v265 = vcvt.s32.f32 %v249
    %v266 = vcvt.s32.f32 %v250
    %v267 = vcvt.s32.f32 %v251
    %v268 = vcvt.s32.f32 %v252
    %v269 = vcvt.s32.f32 %v253
    %v270 = vcvt.s32.f32 %v254
    %v271 = vmul.f32 %v255, 0.0078125
    %v272 = vmul.f32 %v256, 0.0078125
    %v273 = vmul.f32 %v257, 0.0078125
    %v274 = vmul.f32 %v258, 0.0078125
    %v275 = vmul.f32 %v259, 0.0078125
    %v276 = vmul.f32 %v260, 0.0078125
    %v277 = vmul.f32 %v261, 0.0078125
    %v278 = vmul.f32 %v262, 0.0078125
    %v279 = vmul.f32 %v263, 0.0078125
    %v280 = vmul.f32 %v264, 0.0078125
    %v281 = vmul.f32 %v265, 0.0078125
    %v282 = vmul.f32 %v266, 0.0078125
    %v283 = vmul.f32 %v267, 0.0078125
    %v284 = vmul.f32 %v268, 0.0078125
    %v285 = vmul.f32 %v269, 0.0078125
    %v286 = vmul.f32 %v270, 0.0078125
    %v287 = vpack.c.bf16 %v272, %v271
    %v288 = vpack.c.bf16 %v274, %v273
    %v289 = vpack.c.bf16 %v276, %v275
    %v290 = vpack.c.bf16 %v278, %v277
    %v291 = vpack.c.bf16 %v280, %v279
    %v292 = vpack.c.bf16 %v282, %v281
    %v293 = vpack.c.bf16 %v284, %v283
    %v294 = vpack.c.bf16 %v286, %v285
    %v303 = vunpack.c.l.b16 %v287
    %v304 = vunpack.c.h.b16 %v287
    %v305 = vunpack.c.l.b16 %v288
    %v306 = vunpack.c.h.b16 %v288
    %v307 = vunpack.c.l.b16 %v289
    %v308 = vunpack.c.h.b16 %v289
    %v309 = vunpack.c.l.b16 %v290
    %v310 = vunpack.c.h.b16 %v290
    %v311 = vunpack.c.l.b16 %v291
    %v312 = vunpack.c.h.b16 %v291
    %v313 = vunpack.c.l.b16 %v292
    %v314 = vunpack.c.h.b16 %v292
    %v315 = vunpack.c.l.b16 %v293
    %v316 = vunpack.c.h.b16 %v293
    %v317 = vunpack.c.l.b16 %v294
    %v318 = vunpack.c.h.b16 %v294
    %v319 = vpack.c.b16 %v303, %v303
    %v320 = vpack.c.b16 %v304, %v304
    %v321 = vpack.c.b16 %v305, %v305
    %v322 = vpack.c.b16 %v306, %v306
    %v323 = vpack.c.b16 %v307, %v307
    %v324 = vpack.c.b16 %v308, %v308
    %v325 = vpack.c.b16 %v309, %v309
    %v326 = vpack.c.b16 %v310, %v310
    %v327 = vpack.c.b16 %v311, %v311
    %v328 = vpack.c.b16 %v312, %v312
    %v329 = vpack.c.b16 %v313, %v313
    %v330 = vpack.c.b16 %v314, %v314
    %v331 = vpack.c.b16 %v315, %v315
    %v332 = vpack.c.b16 %v316, %v316
    %v333 = vpack.c.b16 %v317, %v317
    %v334 = vpack.c.b16 %v318, %v318
    %351 = vst [vmem:[#allocation2] sm:$0xf] %v319
    %352 = vst [vmem:[#allocation2 + $0x4] sm:$0xf] %v320
    %353 = vst [vmem:[#allocation2 + $0x8] sm:$0xf] %v321
    %354 = vst [vmem:[#allocation2 + $0xc] sm:$0xf] %v322
    %355 = vst [vmem:[#allocation2 + $0x10] sm:$0xf] %v323
    %356 = vst [vmem:[#allocation2 + $0x14] sm:$0xf] %v324
    %357 = vst [vmem:[#allocation2 + $0x18] sm:$0xf] %v325
    %358 = vst [vmem:[#allocation2 + $0x1c] sm:$0xf] %v326
    %359 = vst [vmem:[#allocation2 + $0x20] sm:$0xf] %v327
    %360 = vst [vmem:[#allocation2 + $0x24] sm:$0xf] %v328
    %361 = vst [vmem:[#allocation2 + $0x28] sm:$0xf] %v329
    %362 = vst [vmem:[#allocation2 + $0x2c] sm:$0xf] %v330
    %363 = vst [vmem:[#allocation2 + $0x30] sm:$0xf] %v331
    %364 = vst [vmem:[#allocation2 + $0x34] sm:$0xf] %v332
    %365 = vst [vmem:[#allocation2 + $0x38] sm:$0xf] %v333
    %366 = vst [vmem:[#allocation2 + $0x3c] sm:$0xf] %v334
    // Predicated region
    $region14: #{tpu_custom_call.1} parent=1 // pred_check
      _
    $region15: #{tpu_custom_call.1} parent=1 // pred_check_branch
      %368 = sbr.rel (0) target = $region17
    $region16: #{tpu_custom_call.1} parent=1 // pred_region
      %s370 = ssub.s32 1024, 1024
      %371 = vsyncadd [#allocation3], %s370
      %s372 = sshll.u32 [#allocation2], 4
      %s373 = int_to_ptr.vmem [resolvable:$true] %s372
      %378 = dma.vmem_to_hbm [thread:$0]  %s373, 1024, %s3, [#allocation3], 64, 64, 4
    $region17: #{tpu_custom_call.1} parent=1 // pred_fallthru
      _
    // Predicated region
    $region18: #{tpu_custom_call.1} parent=1 // pred_check
      _
    $region19: #{tpu_custom_call.1} parent=1 // pred_check_branch
      %380 = sbr.rel (0) target = $region21
    $region20: #{tpu_custom_call.1} parent=1 // pred_region
      %381 = dma.done [#allocation3], 1024
    $region21: #{tpu_custom_call.1} parent=1 // pred_fallthru
      _
    %382 = vsyncpa [#allocation3], 1

</llo_original>
